<compile_context>
chip_gen: v5e
topology: v5e:2x2
jax: 0.10.0
libtpu: 0.0.40
codegen_flags: <defaults>
</compile_context>

<pallas_src>
import jax
import jax.numpy as jnp
from jax.experimental import pallas as pl
from jax.experimental.pallas import tpu as pltpu

HIDDEN1 = 128
HIDDEN2 = 128
HIDDEN3 = 64
LANE = 128  # pad hidden-64 and out_dim up to a full lane width


def _round_up(n, m):
    return (n + m - 1) // m * m


def _dqn_kernel(x_ref,
                w1_ref, b1_ref,
                w2_ref, b2_ref,
                w3_ref, b3_ref,
                w4_ref, b4_ref,
                o_ref):
    cdt = w1_ref.dtype                                    # matmul operand dtype (f32 or bf16)
    x = x_ref[...].astype(cdt)                            # (TB, in_dim)

    # MXU matmuls accumulate in f32; bias add + ReLU stay in f32 (v5e-safe),
    # then cast back to the compute dtype for the next matmul.
    h1 = jnp.dot(x, w1_ref[...], preferred_element_type=jnp.float32) + b1_ref[...]
    h1 = jnp.maximum(h1, 0.0).astype(cdt)                 # (TB, 128)

    h2 = jnp.dot(h1, w2_ref[...], preferred_element_type=jnp.float32) + b2_ref[...]
    h2 = jnp.maximum(h2, 0.0).astype(cdt)                 # (TB, 128)

    h3 = jnp.dot(h2, w3_ref[...], preferred_element_type=jnp.float32) + b3_ref[...]
    h3 = jnp.maximum(h3, 0.0).astype(cdt)                 # (TB, 128)  cols 64..127 stay zero

    out = jnp.dot(h3, w4_ref[...], preferred_element_type=jnp.float32) + b4_ref[...]
    o_ref[...] = out.astype(o_ref.dtype)                  # (TB, 128) lane-dense, unmasked store


def dqn_forward(x, params, *, tile_b=256, compute_dtype=jnp.float32):
    """x: (B, input_dim) f32. params: dict of (in,out) weights and (1,out) biases."""
    B, in_dim = x.shape
    out_dim = params["w4"].shape[1]

    # Batch tiling: tile_b multiple of 8 (sublane), shrink for tiny batches.
    tile_b = min(tile_b, _round_up(B, 8))
    b_pad = _round_up(B, tile_b)
    x_p = x if b_pad == B else jnp.pad(x, ((0, b_pad - B), (0, 0)))

    # Pad hidden-64 and out_dim to 128 lanes (exact: padded w4 rows are zero so
    # they contribute nothing; padded output cols are sliced off afterwards).
    w1 = params["w1"].astype(compute_dtype)
    w2 = params["w2"].astype(compute_dtype)
    w3 = jnp.pad(params["w3"], ((0, 0), (0, LANE - HIDDEN3))).astype(compute_dtype)
    w4 = jnp.pad(params["w4"], ((0, LANE - HIDDEN3), (0, LANE - out_dim))).astype(compute_dtype)
    b1 = params["b1"].astype(jnp.float32)
    b2 = params["b2"].astype(jnp.float32)
    b3 = jnp.pad(params["b3"], ((0, 0), (0, LANE - HIDDEN3))).astype(jnp.float32)
    b4 = jnp.pad(params["b4"], ((0, 0), (0, LANE - out_dim))).astype(jnp.float32)

    grid = (b_pad // tile_b,)

    def resident(a):  # weights/biases: same block every grid step -> VMEM-resident
        return pl.BlockSpec(a.shape, lambda i: (0, 0))

    flops = 2 * b_pad * (in_dim * HIDDEN1 + HIDDEN1 * HIDDEN2
                         + HIDDEN2 * LANE + LANE * LANE)
    bytes_accessed = (
        x_p.size * x_p.dtype.itemsize
        + sum(int(a.size) * a.dtype.itemsize for a in (w1, b1, w2, b2, w3, b3, w4, b4))
        + b_pad * LANE * 4)

    out_pad = pl.pallas_call(
        _dqn_kernel,
        out_shape=jax.ShapeDtypeStruct((b_pad, LANE), jnp.float32),
        grid=grid,
        in_specs=[
            pl.BlockSpec((tile_b, in_dim), lambda i: (i, 0)),   # x streams per batch tile
            resident(w1), resident(b1),
            resident(w2), resident(b2),
            resident(w3), resident(b3),
            resident(w4), resident(b4),
        ],
        out_specs=pl.BlockSpec((tile_b, LANE), lambda i: (i, 0)),
        compiler_params=pltpu.CompilerParams(
            dimension_semantics=("parallel",)),                 # dual-TC on v7x
        cost_estimate=pl.CostEstimate(
            flops=int(flops), transcendentals=0, bytes_accessed=int(bytes_accessed)),
    )(x_p, w1, b1, w2, b2, w3, b3, w4, b4)

    return out_pad[:B, :out_dim]


def init_params(key, input_dim=5, output_dim=3):
    """Deterministic synthetic init mirroring nn.Linear's U(-1/sqrt(fan_in), 1/sqrt(fan_in))."""
    dims = [(input_dim, HIDDEN1), (HIDDEN1, HIDDEN2), (HIDDEN2, HIDDEN3), (HIDDEN3, output_dim)]
    params = {}
    for idx, (fan_in, fan_out) in enumerate(dims, start=1):
        key, kw, kb = jax.random.split(key, 3)
        bound = 1.0 / (fan_in ** 0.5)
        # stored already transposed to (in, out) for x @ W
        params[f"w{idx}"] = jax.random.uniform(
            kw, (fan_in, fan_out), jnp.float32, minval=-bound, maxval=bound)
        params[f"b{idx}"] = jax.random.uniform(
            kb, (1, fan_out), jnp.float32, minval=-bound, maxval=bound)
    return params


def dqn_reference(x, params):
    h = x
    for i in range(1, 4):
        h = jnp.maximum(h @ params[f"w{i}"] + params[f"b{i}"], 0.0)
    return h @ params["w4"] + params["b4"]


if __name__ == "__main__":
    key = jax.random.PRNGKey(0)
    k_params, k_x = jax.random.split(key)

    input_dim, output_dim, batch = 5, 3, 8
    params = init_params(k_params, input_dim, output_dim)
    x = jax.random.normal(k_x, (batch, input_dim), dtype=jnp.float32)
    ref = dqn_reference(x, params)

    # f32 path (bit-faithful to the PyTorch module).
    out = jax.block_until_ready(dqn_forward(x, params))
    assert out.shape == (batch, output_dim)
    assert jnp.allclose(out, ref, atol=1e-4, rtol=1e-4), "f32 mismatch vs reference"

    # bf16 matmul-operand path (MXU fast path on v6e/v7x); looser tolerance.
    out_bf16 = jax.block_until_ready(
        dqn_forward(x, params, compute_dtype=jnp.bfloat16))
    assert out_bf16.shape == (batch, output_dim)
    assert jnp.allclose(out_bf16, ref, atol=1e-1, rtol=5e-2), "bf16 mismatch vs reference"

    print("KERNEL_OK")
</pallas_src>

<mosaic_0001>
module attributes {stable_mosaic.version = 11 : i64} {
  func.func @_dqn_kernel(%arg0: i32, %arg1: memref<8x5xf32, #tpu.memory_space<vmem>>, %arg2: memref<5x128xf32, #tpu.memory_space<vmem>>, %arg3: memref<1x128xf32, #tpu.memory_space<vmem>>, %arg4: memref<128x128xf32, #tpu.memory_space<vmem>>, %arg5: memref<1x128xf32, #tpu.memory_space<vmem>>, %arg6: memref<128x128xf32, #tpu.memory_space<vmem>>, %arg7: memref<1x128xf32, #tpu.memory_space<vmem>>, %arg8: memref<128x128xf32, #tpu.memory_space<vmem>>, %arg9: memref<1x128xf32, #tpu.memory_space<vmem>>, %arg10: memref<8x128xf32, #tpu.memory_space<vmem>>) attributes {dimension_semantics = [#tpu.dimension_semantics<parallel>], iteration_bounds = array<i64: 1>, scalar_prefetch = 0 : i64, scratch_operands = 0 : i64, tpu.core_type = #tpu.core_type<tc>, window_params = [{transform_indices = @transform_0, window_bounds = array<i64: 8, 5>}, {pipeline_mode = #tpu.pipeline_mode<synchronous>, transform_indices = @transform_1, window_bounds = array<i64: 5, 128>}, {pipeline_mode = #tpu.pipeline_mode<synchronous>, transform_indices = @transform_2, window_bounds = array<i64: 1, 128>}, {pipeline_mode = #tpu.pipeline_mode<synchronous>, transform_indices = @transform_3, window_bounds = array<i64: 128, 128>}, {pipeline_mode = #tpu.pipeline_mode<synchronous>, transform_indices = @transform_4, window_bounds = array<i64: 1, 128>}, {pipeline_mode = #tpu.pipeline_mode<synchronous>, transform_indices = @transform_5, window_bounds = array<i64: 128, 128>}, {pipeline_mode = #tpu.pipeline_mode<synchronous>, transform_indices = @transform_6, window_bounds = array<i64: 1, 128>}, {pipeline_mode = #tpu.pipeline_mode<synchronous>, transform_indices = @transform_7, window_bounds = array<i64: 128, 128>}, {pipeline_mode = #tpu.pipeline_mode<synchronous>, transform_indices = @transform_8, window_bounds = array<i64: 1, 128>}, {transform_indices = @transform_9, window_bounds = array<i64: 8, 128>}]} {
    %c0 = arith.constant 0 : index
    %c0_0 = arith.constant 0 : index
    %0 = vector.load %arg1[%c0, %c0_0] : memref<8x5xf32, #tpu.memory_space<vmem>>, vector<8x5xf32>
    %c0_1 = arith.constant 0 : index
    %c0_2 = arith.constant 0 : index
    %1 = vector.load %arg2[%c0_1, %c0_2] : memref<5x128xf32, #tpu.memory_space<vmem>>, vector<5x128xf32>
    %cst = arith.constant dense<0.000000e+00> : vector<8x128xf32>
    %2 = tpu.matmul %0, %1, %cst {dimension_numbers = #tpu.dot_dimension_numbers<[1], [0], [0], [1], [0, 0, 1, 1], [], []>} : vector<8x5xf32>, vector<5x128xf32>, vector<8x128xf32> -> vector<8x128xf32>
    %c0_3 = arith.constant 0 : index
    %c0_4 = arith.constant 0 : index
    %3 = vector.load %arg3[%c0_3, %c0_4] : memref<1x128xf32, #tpu.memory_space<vmem>>, vector<1x128xf32>
    %4 = vector.broadcast %3 : vector<1x128xf32> to vector<8x128xf32>
    %5 = arith.addf %2, %4 : vector<8x128xf32>
    %cst_5 = arith.constant 0.000000e+00 : f32
    %6 = vector.broadcast %cst_5 : f32 to vector<8x128xf32>
    %7 = arith.maximumf %5, %6 : vector<8x128xf32>
    %c0_6 = arith.constant 0 : index
    %c0_7 = arith.constant 0 : index
    %8 = vector.load %arg4[%c0_6, %c0_7] : memref<128x128xf32, #tpu.memory_space<vmem>>, vector<128x128xf32>
    %cst_8 = arith.constant dense<0.000000e+00> : vector<8x128xf32>
    %9 = tpu.matmul %7, %8, %cst_8 {dimension_numbers = #tpu.dot_dimension_numbers<[1], [0], [0], [1], [0, 0, 1, 1], [], []>} : vector<8x128xf32>, vector<128x128xf32>, vector<8x128xf32> -> vector<8x128xf32>
    %c0_9 = arith.constant 0 : index
    %c0_10 = arith.constant 0 : index
    %10 = vector.load %arg5[%c0_9, %c0_10] : memref<1x128xf32, #tpu.memory_space<vmem>>, vector<1x128xf32>
    %11 = vector.broadcast %10 : vector<1x128xf32> to vector<8x128xf32>
    %12 = arith.addf %9, %11 : vector<8x128xf32>
    %cst_11 = arith.constant 0.000000e+00 : f32
    %13 = vector.broadcast %cst_11 : f32 to vector<8x128xf32>
    %14 = arith.maximumf %12, %13 : vector<8x128xf32>
    %c0_12 = arith.constant 0 : index
    %c0_13 = arith.constant 0 : index
    %15 = vector.load %arg6[%c0_12, %c0_13] : memref<128x128xf32, #tpu.memory_space<vmem>>, vector<128x128xf32>
    %cst_14 = arith.constant dense<0.000000e+00> : vector<8x128xf32>
    %16 = tpu.matmul %14, %15, %cst_14 {dimension_numbers = #tpu.dot_dimension_numbers<[1], [0], [0], [1], [0, 0, 1, 1], [], []>} : vector<8x128xf32>, vector<128x128xf32>, vector<8x128xf32> -> vector<8x128xf32>
    %c0_15 = arith.constant 0 : index
    %c0_16 = arith.constant 0 : index
    %17 = vector.load %arg7[%c0_15, %c0_16] : memref<1x128xf32, #tpu.memory_space<vmem>>, vector<1x128xf32>
    %18 = vector.broadcast %17 : vector<1x128xf32> to vector<8x128xf32>
    %19 = arith.addf %16, %18 : vector<8x128xf32>
    %cst_17 = arith.constant 0.000000e+00 : f32
    %20 = vector.broadcast %cst_17 : f32 to vector<8x128xf32>
    %21 = arith.maximumf %19, %20 : vector<8x128xf32>
    %c0_18 = arith.constant 0 : index
    %c0_19 = arith.constant 0 : index
    %22 = vector.load %arg8[%c0_18, %c0_19] : memref<128x128xf32, #tpu.memory_space<vmem>>, vector<128x128xf32>
    %cst_20 = arith.constant dense<0.000000e+00> : vector<8x128xf32>
    %23 = tpu.matmul %21, %22, %cst_20 {dimension_numbers = #tpu.dot_dimension_numbers<[1], [0], [0], [1], [0, 0, 1, 1], [], []>} : vector<8x128xf32>, vector<128x128xf32>, vector<8x128xf32> -> vector<8x128xf32>
    %c0_21 = arith.constant 0 : index
    %c0_22 = arith.constant 0 : index
    %24 = vector.load %arg9[%c0_21, %c0_22] : memref<1x128xf32, #tpu.memory_space<vmem>>, vector<1x128xf32>
    %25 = vector.broadcast %24 : vector<1x128xf32> to vector<8x128xf32>
    %26 = arith.addf %23, %25 : vector<8x128xf32>
    %c0_23 = arith.constant 0 : index
    %c0_24 = arith.constant 0 : index
    %27 = vector.load %arg10[%c0_23, %c0_24] : memref<8x128xf32, #tpu.memory_space<vmem>>, vector<8x128xf32>
    tpu.vector_store %arg10[%c0_23, %c0_24], %26 {strides = array<i32>} : memref<8x128xf32, #tpu.memory_space<vmem>>, vector<8x128xf32>,
    return
  }
  func.func @transform_0(%arg0: i32) -> (i32, i32) {
    %c0_i32 = arith.constant 0 : i32
    %c0_i32_0 = arith.constant 0 : i32
    return %arg0, %c0_i32 : i32, i32
  }
  func.func @transform_1(%arg0: i32) -> (i32, i32) {
    %c0_i32 = arith.constant 0 : i32
    %c0_i32_0 = arith.constant 0 : i32
    %c0_i32_1 = arith.constant 0 : i32
    return %c0_i32, %c0_i32_0 : i32, i32
  }
  func.func @transform_2(%arg0: i32) -> (i32, i32) {
    %c0_i32 = arith.constant 0 : i32
    %c0_i32_0 = arith.constant 0 : i32
    %c0_i32_1 = arith.constant 0 : i32
    return %c0_i32, %c0_i32_0 : i32, i32
  }
  func.func @transform_3(%arg0: i32) -> (i32, i32) {
    %c0_i32 = arith.constant 0 : i32
    %c0_i32_0 = arith.constant 0 : i32
    %c0_i32_1 = arith.constant 0 : i32
    return %c0_i32, %c0_i32_0 : i32, i32
  }
  func.func @transform_4(%arg0: i32) -> (i32, i32) {
    %c0_i32 = arith.constant 0 : i32
    %c0_i32_0 = arith.constant 0 : i32
    %c0_i32_1 = arith.constant 0 : i32
    return %c0_i32, %c0_i32_0 : i32, i32
  }
  func.func @transform_5(%arg0: i32) -> (i32, i32) {
    %c0_i32 = arith.constant 0 : i32
    %c0_i32_0 = arith.constant 0 : i32
    %c0_i32_1 = arith.constant 0 : i32
    return %c0_i32, %c0_i32_0 : i32, i32
  }
  func.func @transform_6(%arg0: i32) -> (i32, i32) {
    %c0_i32 = arith.constant 0 : i32
    %c0_i32_0 = arith.constant 0 : i32
    %c0_i32_1 = arith.constant 0 : i32
    return %c0_i32, %c0_i32_0 : i32, i32
  }
  func.func @transform_7(%arg0: i32) -> (i32, i32) {
    %c0_i32 = arith.constant 0 : i32
    %c0_i32_0 = arith.constant 0 : i32
    %c0_i32_1 = arith.constant 0 : i32
    return %c0_i32, %c0_i32_0 : i32, i32
  }
  func.func @transform_8(%arg0: i32) -> (i32, i32) {
    %c0_i32 = arith.constant 0 : i32
    %c0_i32_0 = arith.constant 0 : i32
    %c0_i32_1 = arith.constant 0 : i32
    return %c0_i32, %c0_i32_0 : i32, i32
  }
  func.func @transform_9(%arg0: i32) -> (i32, i32) {
    %c0_i32 = arith.constant 0 : i32
    %c0_i32_0 = arith.constant 0 : i32
    return %arg0, %c0_i32 : i32, i32
  }
}

</mosaic_0001>

<llo_original>
// kernel: tpu_custom_call.1
$region0: #{tpu_custom_call.1}
  #allocation0 [shape = 'u32[]', space=smem, size = 0x4, offset = 0x4, fixed_abs, tag = 'smem constant byte address 0x4 - core index']
  #allocation1 [shape = 'u32[72,128]{1,0:T(1,128)}', space=vmem, size = 0x9000, scoped, tag = 'internal scratch']
  %s0 = inlined_call_operand.hbm [shape: f32[8,5], index: 0, kind: input, shape index: {}]
  %s1 = inlined_call_operand.hbm [shape: f32[5,128], index: 1, kind: input, shape index: {}]
  %s2 = inlined_call_operand.vmem [shape: f32[1,128], index: 2, kind: input, shape index: {}]
  %s3 = inlined_call_operand.hbm [shape: f32[128,128], index: 3, kind: input, shape index: {}]
  %s4 = inlined_call_operand.vmem [shape: f32[1,128], index: 4, kind: input, shape index: {}]
  %s5 = inlined_call_operand.hbm [shape: f32[128,128], index: 5, kind: input, shape index: {}]
  %s6 = inlined_call_operand.vmem [shape: f32[1,128], index: 6, kind: input, shape index: {}]
  %s7 = inlined_call_operand.hbm [shape: f32[128,128], index: 7, kind: input, shape index: {}]
  %s8 = inlined_call_operand.vmem [shape: f32[1,128], index: 8, kind: input, shape index: {}]
  %s9 = inlined_call_operand.hbm [shape: f32[8,128], index: 9, kind: output, shape index: {}]
  %s10 = sld [smem:[#allocation0]]
  $region66: #{tpu_custom_call.1} parent=0
    _
  %s12 = ssub.s32 1, %s10
  %s13 = scalar_select 0, %s12, %s10
  $region1: #{tpu_custom_call.1} parent=0
    #allocation2 [shape = 'u8[4096]{0}', space=vmem, size = 0x1000, scoped, tag = 'input window, operand 0, single buffered']
    #allocation3 [shape = 's32[1]{0}', space=sflag, size = 0x4, scoped, tag = 'scoped memory for tpu_custom_call.1']
    #allocation4 [shape = 's32[1]{0}', space=sflag, size = 0x4, scoped, tag = 'scoped memory for tpu_custom_call.1']
    #allocation5 [shape = 'u8[4096]{0}', space=vmem, size = 0x1000, scoped, tag = 'input window, operand 1, single buffered']
    #allocation6 [shape = 's32[1]{0}', space=sflag, size = 0x4, scoped, tag = 'scoped memory for tpu_custom_call.1']
    #allocation7 [shape = 'u8[65536]{0}', space=vmem, size = 0x10000, scoped, tag = 'input window, operand 3, single buffered']
    #allocation8 [shape = 'u8[65536]{0}', space=vmem, size = 0x10000, scoped, tag = 'input window, operand 5, single buffered']
    #allocation9 [shape = 's32[1]{0}', space=sflag, size = 0x4, scoped, tag = 'scoped memory for tpu_custom_call.1']
    #allocation10 [shape = 'u8[65536]{0}', space=vmem, size = 0x10000, scoped, tag = 'input window, operand 7, single buffered']
    #allocation11 [shape = 'u8[4096]{0}', space=vmem, size = 0x1000, scoped, tag = 'output window, operand 0, single buffered']
    %14 = vsyncpa [#allocation3], 0
    %15 = vsyncpa [#allocation6], 0
    %16 = vsyncpa [#allocation9], 0
    %17 = vsyncpa [#allocation4], 0
    // Predicated region
    $region2: #{tpu_custom_call.1} parent=1 // pred_check
      _
    $region3: #{tpu_custom_call.1} parent=1 // pred_check_branch
      %19 = sbr.rel (0) target = $region5
    $region4: #{tpu_custom_call.1} parent=1 // pred_region
      %21 = vsyncadd [#allocation3], 0
      %s23 = sshll.u32 %s0, 4
      %s24 = int_to_ptr.hbm [resolvable:$true] %s23
      %s25 = sshll.u32 [#allocation2], 4
      %s26 = int_to_ptr.vmem [resolvable:$true] %s25
      %28 = dma.hbm_to_vmem [thread:$0]  %s24, 128, %s26, [#allocation3]
    $region5: #{tpu_custom_call.1} parent=1 // pred_fallthru
      _
    // Predicated region
    $region6: #{tpu_custom_call.1} parent=1 // pred_check
      _
    $region7: #{tpu_custom_call.1} parent=1 // pred_check_branch
      %30 = sbr.rel (0) target = $region9
    $region8: #{tpu_custom_call.1} parent=1 // pred_region
      %32 = vsyncadd [#allocation6], 0
      %s34 = sshll.u32 %s1, 4
      %s35 = int_to_ptr.hbm [resolvable:$true] %s34
      %s36 = sshll.u32 [#allocation5], 4
      %s37 = int_to_ptr.vmem [resolvable:$true] %s36
      %39 = dma.hbm_to_vmem [thread:$0]  %s35, 128, %s37, [#allocation6]
    $region9: #{tpu_custom_call.1} parent=1 // pred_fallthru
      _
    // Predicated region
    $region10: #{tpu_custom_call.1} parent=1 // pred_check
      _
    $region11: #{tpu_custom_call.1} parent=1 // pred_check_branch
      %41 = sbr.rel (0) target = $region13
    $region12: #{tpu_custom_call.1} parent=1 // pred_region
      _
    $region13: #{tpu_custom_call.1} parent=1 // pred_fallthru
      _
    // Predicated region
    $region14: #{tpu_custom_call.1} parent=1 // pred_check
      _
    $region15: #{tpu_custom_call.1} parent=1 // pred_check_branch
      %43 = sbr.rel (0) target = $region17
    $region16: #{tpu_custom_call.1} parent=1 // pred_region
      %45 = vsyncadd [#allocation6], 0
      %s46 = sshll.u32 %s3, 4
      %s47 = int_to_ptr.hbm [resolvable:$true] %s46
      %s48 = sshll.u32 [#allocation7], 4
      %s49 = int_to_ptr.vmem [resolvable:$true] %s48
      %54 = dma.hbm_to_vmem [thread:$0]  %s47, 2048, %s49, [#allocation6], 128, 128, 8
    $region17: #{tpu_custom_call.1} parent=1 // pred_fallthru
      _
    // Predicated region
    $region18: #{tpu_custom_call.1} parent=1 // pred_check
      _
    $region19: #{tpu_custom_call.1} parent=1 // pred_check_branch
      %56 = sbr.rel (0) target = $region21
    $region20: #{tpu_custom_call.1} parent=1 // pred_region
      _
    $region21: #{tpu_custom_call.1} parent=1 // pred_fallthru
      _
    // Predicated region
    $region22: #{tpu_custom_call.1} parent=1 // pred_check
      _
    $region23: #{tpu_custom_call.1} parent=1 // pred_check_branch
      %58 = sbr.rel (0) target = $region25
    $region24: #{tpu_custom_call.1} parent=1 // pred_region
      %60 = vsyncadd [#allocation9], 0
      %s61 = sshll.u32 %s5, 4
      %s62 = int_to_ptr.hbm [resolvable:$true] %s61
      %s63 = sshll.u32 [#allocation8], 4
      %s64 = int_to_ptr.vmem [resolvable:$true] %s63
      %69 = dma.hbm_to_vmem [thread:$0]  %s62, 2048, %s64, [#allocation9], 128, 128, 8
    $region25: #{tpu_custom_call.1} parent=1 // pred_fallthru
      _
    // Predicated region
    $region26: #{tpu_custom_call.1} parent=1 // pred_check
      _
    $region27: #{tpu_custom_call.1} parent=1 // pred_check_branch
      %71 = sbr.rel (0) target = $region29
    $region28: #{tpu_custom_call.1} parent=1 // pred_region
      _
    $region29: #{tpu_custom_call.1} parent=1 // pred_fallthru
      _
    // Predicated region
    $region30: #{tpu_custom_call.1} parent=1 // pred_check
      _
    $region31: #{tpu_custom_call.1} parent=1 // pred_check_branch
      %73 = sbr.rel (0) target = $region33
    $region32: #{tpu_custom_call.1} parent=1 // pred_region
      %75 = vsyncadd [#allocation9], 0
      %s76 = sshll.u32 %s7, 4
      %s77 = int_to_ptr.hbm [resolvable:$true] %s76
      %s78 = sshll.u32 [#allocation10], 4
      %s79 = int_to_ptr.vmem [resolvable:$true] %s78
      %84 = dma.hbm_to_vmem [thread:$0]  %s77, 2048, %s79, [#allocation9], 128, 128, 8
    $region33: #{tpu_custom_call.1} parent=1 // pred_fallthru
      _
    // Predicated region
    $region34: #{tpu_custom_call.1} parent=1 // pred_check
      _
    $region35: #{tpu_custom_call.1} parent=1 // pred_check_branch
      %86 = sbr.rel (0) target = $region37
    $region36: #{tpu_custom_call.1} parent=1 // pred_region
      _
    $region37: #{tpu_custom_call.1} parent=1 // pred_fallthru
      _
    // Predicated region
    $region38: #{tpu_custom_call.1} parent=1 // pred_check
      _
    $region39: #{tpu_custom_call.1} parent=1 // pred_check_branch
      %88 = sbr.rel (0) target = $region41
    $region40: #{tpu_custom_call.1} parent=1 // pred_region
      %90 = dma.done [#allocation3], 128
    $region41: #{tpu_custom_call.1} parent=1 // pred_fallthru
      _
    // Predicated region
    $region42: #{tpu_custom_call.1} parent=1 // pred_check
      _
    $region43: #{tpu_custom_call.1} parent=1 // pred_check_branch
      %92 = sbr.rel (0) target = $region45
    $region44: #{tpu_custom_call.1} parent=1 // pred_region
      %94 = dma.done [#allocation6], 128
    $region45: #{tpu_custom_call.1} parent=1 // pred_fallthru
      _
    // Predicated region
    $region46: #{tpu_custom_call.1} parent=1 // pred_check
      _
    $region47: #{tpu_custom_call.1} parent=1 // pred_check_branch
      %96 = sbr.rel (0) target = $region49
    $region48: #{tpu_custom_call.1} parent=1 // pred_region
      %98 = dma.done [#allocation6], 2048
    $region49: #{tpu_custom_call.1} parent=1 // pred_fallthru
      _
    // Predicated region
    $region50: #{tpu_custom_call.1} parent=1 // pred_check
      _
    $region51: #{tpu_custom_call.1} parent=1 // pred_check_branch
      %100 = sbr.rel (0) target = $region53
    $region52: #{tpu_custom_call.1} parent=1 // pred_region
      %102 = dma.done [#allocation9], 2048
    $region53: #{tpu_custom_call.1} parent=1 // pred_fallthru
      _
    // Predicated region
    $region54: #{tpu_custom_call.1} parent=1 // pred_check
      _
    $region55: #{tpu_custom_call.1} parent=1 // pred_check_branch
      %104 = sbr.rel (0) target = $region57
    $region56: #{tpu_custom_call.1} parent=1 // pred_region
      %106 = dma.done [#allocation9], 2048
    $region57: #{tpu_custom_call.1} parent=1 // pred_fallthru
      _
    %v107 = vld [vmem:[#allocation2] sm:$0xff]
    %v108 = vld [vmem:[#allocation5] sm:$0x1f]
    %v109 = vld [vmem:[%s2] sm:$0x1]
    %v111 = vperm.slane %v109, 0
    %vm113 = vcmask 39936
    %v115 = vsel %vm113, %v107, 0
    %vm117 = vcmask 1044480
    %v119 = vsel %vm117, %v108, 0
    %121 = vmatpush.msra.mxu0 0.0
    %122 = vmatpush.msra.mxu0 0.0
    %123 = vmatpush.msra.mxu0 0.0
    %124 = vmatpush.msra.mxu0 0.0
    %125 = vmatpush.msra.mxu0 0.0
    %126 = vmatpush.msra.mxu0 0.0
    %127 = vmatpush.msra.mxu0 0.0
    %128 = vmatpush.msra.mxu0 0.0
    %129 = vmatpush.msra.mxu0 0.0
    %130 = vmatpush.msra.mxu0 0.0
    %131 = vmatpush.msra.mxu0 0.0
    %132 = vmatpush.msra.mxu0 0.0
    %133 = vmatpush.msra.mxu0 0.0
    %134 = vmatpush.msra.mxu0 0.0
    %135 = vmatpush.msra.mxu0 0.0
    %136 = vmatpush.msra.mxu0 %v119
    %137 = vmatmul.f32.gmra.mxu0 %v115
    %v138 = vpop.f32.mrf.mxu0
    %v139 = vadd.f32 %v111, %v138
    %140 = vdwg.mxu0
    %v141 = vmax.f32 %v139, 0.0
    %v142 = vld [vmem:[#allocation7] sm:$0xff]
    %v143 = vld [vmem:[#allocation7 + $0x8] sm:$0xff]
    %v144 = vld [vmem:[#allocation7 + $0x10] sm:$0xff]
    %v145 = vld [vmem:[#allocation7 + $0x18] sm:$0xff]
    %v146 = vld [vmem:[#allocation7 + $0x20] sm:$0xff]
    %v147 = vld [vmem:[#allocation7 + $0x28] sm:$0xff]
    %v148 = vld [vmem:[#allocation7 + $0x30] sm:$0xff]
    %v149 = vld [vmem:[#allocation7 + $0x38] sm:$0xff]
    %v150 = vld [vmem:[#allocation7 + $0x40] sm:$0xff]
    %v151 = vld [vmem:[#allocation7 + $0x48] sm:$0xff]
    %v152 = vld [vmem:[#allocation7 + $0x50] sm:$0xff]
    %v153 = vld [vmem:[#allocation7 + $0x58] sm:$0xff]
    %v154 = vld [vmem:[#allocation7 + $0x60] sm:$0xff]
    %v155 = vld [vmem:[#allocation7 + $0x68] sm:$0xff]
    %v156 = vld [vmem:[#allocation7 + $0x70] sm:$0xff]
    %v157 = vld [vmem:[#allocation7 + $0x78] sm:$0xff]
    %v158 = vld [vmem:[%s4] sm:$0x1]
    %v160 = vperm.slane %v158, 0
    %162 = vmatpush.msra.mxu0 %v157
    %163 = vmatpush.msra.mxu0 %v156
    %164 = vmatpush.msra.mxu0 %v155
    %165 = vmatpush.msra.mxu0 %v154
    %166 = vmatpush.msra.mxu0 %v153
    %167 = vmatpush.msra.mxu0 %v152
    %168 = vmatpush.msra.mxu0 %v151
    %169 = vmatpush.msra.mxu0 %v150
    %170 = vmatpush.msra.mxu0 %v149
    %171 = vmatpush.msra.mxu0 %v148
    %172 = vmatpush.msra.mxu0 %v147
    %173 = vmatpush.msra.mxu0 %v146
    %174 = vmatpush.msra.mxu0 %v145
    %175 = vmatpush.msra.mxu0 %v144
    %176 = vmatpush.msra.mxu0 %v143
    %177 = vmatpush.msra.mxu0 %v142
    %178 = vmatmul.f32.gmra.mxu0 %v141
    %v179 = vpop.f32.mrf.mxu0
    %v180 = vadd.f32 %v160, %v179
    %181 = vdwg.mxu0
    %v182 = vmax.f32 %v180, 0.0
    %v183 = vld [vmem:[#allocation8] sm:$0xff]
    %v184 = vld [vmem:[#allocation8 + $0x8] sm:$0xff]
    %v185 = vld [vmem:[#allocation8 + $0x10] sm:$0xff]
    %v186 = vld [vmem:[#allocation8 + $0x18] sm:$0xff]
    %v187 = vld [vmem:[#allocation8 + $0x20] sm:$0xff]
    %v188 = vld [vmem:[#allocation8 + $0x28] sm:$0xff]
    %v189 = vld [vmem:[#allocation8 + $0x30] sm:$0xff]
    %v190 = vld [vmem:[#allocation8 + $0x38] sm:$0xff]
    %v191 = vld [vmem:[#allocation8 + $0x40] sm:$0xff]
    %v192 = vld [vmem:[#allocation8 + $0x48] sm:$0xff]
    %v193 = vld [vmem:[#allocation8 + $0x50] sm:$0xff]
    %v194 = vld [vmem:[#allocation8 + $0x58] sm:$0xff]
    %v195 = vld [vmem:[#allocation8 + $0x60] sm:$0xff]
    %v196 = vld [vmem:[#allocation8 + $0x68] sm:$0xff]
    %v197 = vld [vmem:[#allocation8 + $0x70] sm:$0xff]
    %v198 = vld [vmem:[#allocation8 + $0x78] sm:$0xff]
    %v199 = vld [vmem:[%s6] sm:$0x1]
    %v201 = vperm.slane %v199, 0
    %203 = vmatpush.msra.mxu0 %v198
    %204 = vmatpush.msra.mxu0 %v197
    %205 = vmatpush.msra.mxu0 %v196
    %206 = vmatpush.msra.mxu0 %v195
    %207 = vmatpush.msra.mxu0 %v194
    %208 = vmatpush.msra.mxu0 %v193
    %209 = vmatpush.msra.mxu0 %v192
    %210 = vmatpush.msra.mxu0 %v191
    %211 = vmatpush.msra.mxu0 %v190
    %212 = vmatpush.msra.mxu0 %v189
    %213 = vmatpush.msra.mxu0 %v188
    %214 = vmatpush.msra.mxu0 %v187
    %215 = vmatpush.msra.mxu0 %v186
    %216 = vmatpush.msra.mxu0 %v185
    %217 = vmatpush.msra.mxu0 %v184
    %218 = vmatpush.msra.mxu0 %v183
    %219 = vmatmul.f32.gmra.mxu0 %v182
    %v220 = vpop.f32.mrf.mxu0
    %v221 = vadd.f32 %v201, %v220
    %222 = vdwg.mxu0
    %v223 = vmax.f32 %v221, 0.0
    %v224 = vld [vmem:[#allocation10] sm:$0xff]
    %v225 = vld [vmem:[#allocation10 + $0x8] sm:$0xff]
    %v226 = vld [vmem:[#allocation10 + $0x10] sm:$0xff]
    %v227 = vld [vmem:[#allocation10 + $0x18] sm:$0xff]
    %v228 = vld [vmem:[#allocation10 + $0x20] sm:$0xff]
    %v229 = vld [vmem:[#allocation10 + $0x28] sm:$0xff]
    %v230 = vld [vmem:[#allocation10 + $0x30] sm:$0xff]
    %v231 = vld [vmem:[#allocation10 + $0x38] sm:$0xff]
    %v232 = vld [vmem:[#allocation10 + $0x40] sm:$0xff]
    %v233 = vld [vmem:[#allocation10 + $0x48] sm:$0xff]
    %v234 = vld [vmem:[#allocation10 + $0x50] sm:$0xff]
    %v235 = vld [vmem:[#allocation10 + $0x58] sm:$0xff]
    %v236 = vld [vmem:[#allocation10 + $0x60] sm:$0xff]
    %v237 = vld [vmem:[#allocation10 + $0x68] sm:$0xff]
    %v238 = vld [vmem:[#allocation10 + $0x70] sm:$0xff]
    %v239 = vld [vmem:[#allocation10 + $0x78] sm:$0xff]
    %v240 = vld [vmem:[%s8] sm:$0x1]
    %v242 = vperm.slane %v240, 0
    %244 = vmatpush.msra.mxu0 %v239
    %245 = vmatpush.msra.mxu0 %v238
    %246 = vmatpush.msra.mxu0 %v237
    %247 = vmatpush.msra.mxu0 %v236
    %248 = vmatpush.msra.mxu0 %v235
    %249 = vmatpush.msra.mxu0 %v234
    %250 = vmatpush.msra.mxu0 %v233
    %251 = vmatpush.msra.mxu0 %v232
    %252 = vmatpush.msra.mxu0 %v231
    %253 = vmatpush.msra.mxu0 %v230
    %254 = vmatpush.msra.mxu0 %v229
    %255 = vmatpush.msra.mxu0 %v228
    %256 = vmatpush.msra.mxu0 %v227
    %257 = vmatpush.msra.mxu0 %v226
    %258 = vmatpush.msra.mxu0 %v225
    %259 = vmatpush.msra.mxu0 %v224
    %260 = vmatmul.f32.gmra.mxu0 %v223
    %v261 = vpop.f32.mrf.mxu0
    %v262 = vadd.f32 %v242, %v261
    %263 = vdwg.mxu0
    %264 = vst [vmem:[#allocation11] sm:$0xff] %v262
    // Predicated region
    $region58: #{tpu_custom_call.1} parent=1 // pred_check
      _
    $region59: #{tpu_custom_call.1} parent=1 // pred_check_branch
      %266 = sbr.rel (0) target = $region61
    $region60: #{tpu_custom_call.1} parent=1 // pred_region
      %268 = vsyncadd [#allocation4], 0
      %s270 = sshll.u32 [#allocation11], 4
      %s271 = int_to_ptr.vmem [resolvable:$true] %s270
      %s272 = sshll.u32 %s9, 4
      %s273 = int_to_ptr.hbm [resolvable:$true] %s272
      %275 = dma.vmem_to_hbm [thread:$0]  %s271, 128, %s273, [#allocation4]
    $region61: #{tpu_custom_call.1} parent=1 // pred_fallthru
      _
    // Predicated region
    $region62: #{tpu_custom_call.1} parent=1 // pred_check
      _
    $region63: #{tpu_custom_call.1} parent=1 // pred_check_branch
      %277 = sbr.rel (0) target = $region65
    $region64: #{tpu_custom_call.1} parent=1 // pred_region
      %279 = dma.done [#allocation4], 128
    $region65: #{tpu_custom_call.1} parent=1 // pred_fallthru
      _
    %280 = vsyncpa [#allocation3], 1
    %281 = vsyncpa [#allocation6], 1
    %282 = vsyncpa [#allocation9], 1
    %283 = vsyncpa [#allocation4], 1

</llo_original>
